<compile_context>
chip_gen: v7x
topology: tpu7x:2x2x1
jax: 0.10.0
libtpu: 0.0.40
codegen_flags: <defaults>
</compile_context>

<pallas_src>
import jax
import jax.numpy as jnp
from jax import lax
from jax.experimental import pallas as pl
from jax.experimental.pallas import tpu as pltpu

_K_SUBLANE_PAD = 16  # bf16 sublane packing minimum for the weight's Kout axis.


def _linear_kernel(x_ref, w_ref, b_ref, o_ref):
    """One batch tile: o = x @ W^T + b, single MXU call, f32 accumulation.

    x_ref : [TB, F]   f32 activation tile (cast to bf16 in-kernel)
    w_ref : [Kp, F]   bf16 weight, Kout padded to 16, F dense on lanes
    b_ref : [1, Kp]   f32 bias
    o_ref : [TB, Kp]  f32 output tile
    """
    x_bf16 = x_ref[...].astype(jnp.bfloat16)
    acc = lax.dot_general(
        x_bf16,
        w_ref[...],
        dimension_numbers=(((1,), (1,)), ((), ())),  # contract both on F
        preferred_element_type=jnp.float32,
    )
    o_ref[...] = acc + b_ref[...]


def _choose_block_b(B):
    """Batch tile size: full-dim single step for small B, else >=2 steps."""
    if B <= 128:
        # Single grid step; 'block equals full array dim' exempts B from the
        # multiple-of-8 rule.  Keep this invariant if this logic changes.
        return B
    # >= 2 grid steps so the "parallel" batch axis shards across v7x's two
    # TensorCores, tiles capped at 256 rows (f32 x tile ~4.7 MiB, ~9.4 MiB
    # double-buffered) to fit v5e's 16 MiB default scoped VMEM.
    half = (B + 1) // 2
    return min(256, ((half + 127) // 128) * 128)  # multiple of 128 (and 8)


@jax.jit
def _triplets_head_matmul(x, w_pad, b_pad):
    """y_pad = x @ w_pad^T + b_pad, tiled only over the batch axis."""
    B, F = x.shape
    Kp, F2 = w_pad.shape
    assert F == F2
    block_b = _choose_block_b(B)
    grid = (pl.cdiv(B, block_b),)

    cost = pl.CostEstimate(
        flops=2 * B * F * Kp,
        transcendentals=0,
        bytes_accessed=(
            x.size * x.dtype.itemsize          # f32 activation read
            + w_pad.size * w_pad.dtype.itemsize  # bf16 weight read
            + b_pad.size * b_pad.dtype.itemsize  # f32 bias read
            + B * Kp * 4                         # f32 output write
        ),
    )

    return pl.pallas_call(
        _linear_kernel,
        out_shape=jax.ShapeDtypeStruct((B, Kp), jnp.float32),
        grid_spec=pltpu.PrefetchScalarGridSpec(
            num_scalar_prefetch=0,
            grid=grid,
            in_specs=[
                pl.BlockSpec((block_b, F), lambda i: (i, 0)),
                pl.BlockSpec((Kp, F), lambda i: (0, 0)),
                pl.BlockSpec((1, Kp), lambda i: (0, 0)),
            ],
            out_specs=pl.BlockSpec((block_b, Kp), lambda i: (i, 0)),
        ),
        compiler_params=pltpu.CompilerParams(
            # Batch axis only — independent tiles; >=2 steps for B>128 so this
            # actually shards across v7x's two TensorCores.
            dimension_semantics=("parallel",),
        ),
        cost_estimate=cost,
    )(x, w_pad, b_pad)


def triplets_head_forward(x, w_pad, b_pad, output_k):
    """y = x @ W^T + b (Linear head), returned as f32 [B, output_k]."""
    y_pad = _triplets_head_matmul(x, w_pad, b_pad)
    return y_pad[:, :output_k]


class TripletsNet6cHeadPallas:
    """JAX/Pallas port of TripletsNet6cHead (the nn.Linear head)."""

    def __init__(self, input_sz=24, output_k=10, num_features=512, seed=0):
        if input_sz == 24:
            features_sp_size = 3
        elif input_sz == 64:
            features_sp_size = 8
        else:
            raise ValueError("input_sz must be 24 or 64")
        in_features = num_features * features_sp_size * features_sp_size

        # Deterministic init mimicking nn.Linear default:
        # U(-1/sqrt(in_features), 1/sqrt(in_features)) for weight & bias.
        key = jax.random.PRNGKey(seed)
        kw, kb = jax.random.split(key)
        bound = 1.0 / (in_features ** 0.5)
        w = jax.random.uniform(
            kw, (output_k, in_features), jnp.float32, -bound, bound
        )
        b = jax.random.uniform(kb, (output_k,), jnp.float32, -bound, bound)

        # Pad Kout 10 -> 16 (bf16 sublane minimum), keep F dense on the lane
        # axis: weight stored as [Kpad, F] bf16 (~147 KiB instead of 1.18 MiB).
        k_pad = max(
            _K_SUBLANE_PAD,
            ((output_k + _K_SUBLANE_PAD - 1) // _K_SUBLANE_PAD) * _K_SUBLANE_PAD,
        )
        w_pad = jnp.zeros((k_pad, in_features), jnp.float32)
        w_pad = w_pad.at[:output_k, :].set(w)
        self.w_pad = w_pad.astype(jnp.bfloat16)           # [Kpad, F] bf16
        self.b_pad = (
            jnp.zeros((1, k_pad), jnp.float32).at[0, :output_k].set(b)
        )                                                   # [1, Kpad] f32

        # Unpadded f32 copies for reference checks.
        self.w = w
        self.b = b
        self.in_features = in_features
        self.output_k = output_k

    def __call__(self, x, kmeans_use_features=False):
        if kmeans_use_features:
            return x
        return triplets_head_forward(x, self.w_pad, self.b_pad, self.output_k)


if __name__ == "__main__":
    # Module-consistent shapes: input_sz=24 -> in_features = 512*3*3 = 4608.
    batch = 4
    output_k = 10

    head = TripletsNet6cHeadPallas(input_sz=24, output_k=output_k, seed=0)

    key = jax.random.PRNGKey(0)
    x = jax.random.normal(key, (batch, head.in_features), jnp.float32)

    # kmeans_use_features=True path (identity, no kernel).
    feats = head(x, kmeans_use_features=True)
    assert feats.shape == x.shape

    # Main path: Pallas linear kernel.
    y = head(x)
    y = jax.block_until_ready(y)
    assert y.shape == (batch, output_k)
    assert y.dtype == jnp.float32

    # Correctness vs a reference using the same bf16-cast operands (tight) ...
    x_bf = x.astype(jnp.bfloat16).astype(jnp.float32)
    w_bf = head.w_pad[:output_k, :].astype(jnp.float32)
    y_ref_bf16 = x_bf @ w_bf.T + head.b
    assert jnp.allclose(y, y_ref_bf16, atol=1e-3, rtol=1e-3)

    # ... and a sanity check against the full-f32 reference (bf16 noise only).
    y_ref_f32 = x @ head.w.T + head.b
    assert jnp.allclose(y, y_ref_f32, atol=3e-2, rtol=3e-2)

    print("KERNEL_OK")
</pallas_src>

<mosaic_0001>
module attributes {stable_mosaic.version = 11 : i64} {
  func.func @_linear_kernel(%arg0: i32, %arg1: memref<4x4608xf32, #tpu.memory_space<vmem>>, %arg2: memref<16x4608xbf16, #tpu.memory_space<vmem>>, %arg3: memref<1x16xf32, #tpu.memory_space<vmem>>, %arg4: memref<4x16xf32, #tpu.memory_space<vmem>>) attributes {dimension_semantics = [#tpu.dimension_semantics<parallel>], iteration_bounds = array<i64: 1>, scalar_prefetch = 0 : i64, scratch_operands = 0 : i64, tpu.core_type = #tpu.core_type<tc>, window_params = [{transform_indices = @transform_0, window_bounds = array<i64: 4, 4608>}, {pipeline_mode = #tpu.pipeline_mode<synchronous>, transform_indices = @transform_1, window_bounds = array<i64: 16, 4608>}, {pipeline_mode = #tpu.pipeline_mode<synchronous>, transform_indices = @transform_2, window_bounds = array<i64: 1, 16>}, {transform_indices = @transform_3, window_bounds = array<i64: 4, 16>}]} {
    %c0 = arith.constant 0 : index
    %c0_0 = arith.constant 0 : index
    %0 = vector.load %arg1[%c0, %c0_0] : memref<4x4608xf32, #tpu.memory_space<vmem>>, vector<4x4608xf32>
    %1 = arith.truncf %0 : vector<4x4608xf32> to vector<4x4608xbf16>
    %c0_1 = arith.constant 0 : index
    %c0_2 = arith.constant 0 : index
    %2 = vector.load %arg2[%c0_1, %c0_2] : memref<16x4608xbf16, #tpu.memory_space<vmem>>, vector<16x4608xbf16>
    %cst = arith.constant dense<0.000000e+00> : vector<4x16xf32>
    %3 = tpu.matmul %1, %2, %cst {dimension_numbers = #tpu.dot_dimension_numbers<[1], [1], [0], [0], [0, 0, 1, 0], [], []>} : vector<4x4608xbf16>, vector<16x4608xbf16>, vector<4x16xf32> -> vector<4x16xf32>
    %c0_3 = arith.constant 0 : index
    %c0_4 = arith.constant 0 : index
    %4 = vector.load %arg3[%c0_3, %c0_4] : memref<1x16xf32, #tpu.memory_space<vmem>>, vector<1x16xf32>
    %5 = vector.broadcast %4 : vector<1x16xf32> to vector<4x16xf32>
    %6 = arith.addf %3, %5 : vector<4x16xf32>
    %c0_5 = arith.constant 0 : index
    %c0_6 = arith.constant 0 : index
    %7 = vector.load %arg4[%c0_5, %c0_6] : memref<4x16xf32, #tpu.memory_space<vmem>>, vector<4x16xf32>
    tpu.vector_store %arg4[%c0_5, %c0_6], %6 {strides = array<i32>} : memref<4x16xf32, #tpu.memory_space<vmem>>, vector<4x16xf32>,
    return
  }
  func.func @transform_0(%arg0: i32) -> (i32, i32) {
    %c0_i32 = arith.constant 0 : i32
    %c0_i32_0 = arith.constant 0 : i32
    return %arg0, %c0_i32 : i32, i32
  }
  func.func @transform_1(%arg0: i32) -> (i32, i32) {
    %c0_i32 = arith.constant 0 : i32
    %c0_i32_0 = arith.constant 0 : i32
    %c0_i32_1 = arith.constant 0 : i32
    return %c0_i32, %c0_i32_0 : i32, i32
  }
  func.func @transform_2(%arg0: i32) -> (i32, i32) {
    %c0_i32 = arith.constant 0 : i32
    %c0_i32_0 = arith.constant 0 : i32
    %c0_i32_1 = arith.constant 0 : i32
    return %c0_i32, %c0_i32_0 : i32, i32
  }
  func.func @transform_3(%arg0: i32) -> (i32, i32) {
    %c0_i32 = arith.constant 0 : i32
    %c0_i32_0 = arith.constant 0 : i32
    return %arg0, %c0_i32 : i32, i32
  }
}

</mosaic_0001>

<llo_original>
// kernel: _triplets_head_matmul.1
$region0: #{_triplets_head_matmul.1}
  #allocation0 [shape = 'u32[]', space=smem, size = 0x4, offset = 0x4, fixed_abs, tag = 'smem constant byte address 0x4 - core index']
  #allocation1 [shape = 'u32[144,128]{1,0:T(1,128)}', space=vmem, size = 0x12000, scoped, tag = 'internal scratch']
  %s0 = inlined_call_operand.hbm [shape: f32[4,4608], index: 0, kind: input, shape index: {}]
  %s1 = inlined_call_operand.hbm [shape: bf16[16,4608], index: 1, kind: input, shape index: {}]
  %s2 = inlined_call_operand.vmem [shape: f32[1,16], index: 2, kind: input, shape index: {}]
  %s3 = inlined_call_operand.hbm [shape: f32[4,16], index: 3, kind: output, shape index: {}]
  %s4 = sld [smem:[#allocation0]]
  $region30: #{_triplets_head_matmul.1} parent=0
    _
  %s6 = ssub.s32 1, %s4
  %s7 = scalar_select 0, %s6, %s4
  $region1: #{_triplets_head_matmul.1} parent=0
    #allocation2 [shape = 'u8[73728]{0}', space=vmem, size = 0x12000, scoped, tag = 'input window, operand 0, single buffered']
    #allocation3 [shape = 's32[1]{0}', space=sflag, size = 0x4, scoped, tag = 'scoped memory for _triplets_head_matmul.1']
    #allocation4 [shape = 's32[1]{0}', space=sflag, size = 0x4, scoped, tag = 'scoped memory for _triplets_head_matmul.1']
    #allocation5 [shape = 'u8[147456]{0}', space=vmem, size = 0x24000, scoped, tag = 'input window, operand 1, single buffered']
    #allocation6 [shape = 's32[1]{0}', space=sflag, size = 0x4, scoped, tag = 'scoped memory for _triplets_head_matmul.1']
    #allocation7 [shape = 'u8[2048]{0}', space=vmem, size = 0x800, scoped, tag = 'output window, operand 0, single buffered']
    %8 = vsyncpa [#allocation3], 0
    %9 = vsyncpa [#allocation6], 0
    %10 = vsyncpa [#allocation4], 0
    // Predicated region
    $region2: #{_triplets_head_matmul.1} parent=1 // pred_check
      _
    $region3: #{_triplets_head_matmul.1} parent=1 // pred_check_branch
      %12 = sbr.rel (0) target = $region5
    $region4: #{_triplets_head_matmul.1} parent=1 // pred_region
      %s14 = ssub.s32 2304, 2304
      %15 = vsyncadd [#allocation3], %s14
      %s17 = sshll.u32 [#allocation2], 4
      %s18 = int_to_ptr.vmem [resolvable:$true] %s17
      %20 = dma.hbm_to_vmem [thread:$0]  %s0, 2304, %s18, [#allocation3]
    $region5: #{_triplets_head_matmul.1} parent=1 // pred_fallthru
      _
    // Predicated region
    $region6: #{_triplets_head_matmul.1} parent=1 // pred_check
      _
    $region7: #{_triplets_head_matmul.1} parent=1 // pred_check_branch
      %22 = sbr.rel (0) target = $region9
    $region8: #{_triplets_head_matmul.1} parent=1 // pred_region
      %s24 = ssub.s32 4608, 4608
      %25 = vsyncadd [#allocation6], %s24
      %s26 = sshll.u32 [#allocation5], 4
      %s27 = int_to_ptr.vmem [resolvable:$true] %s26
      %32 = dma.hbm_to_vmem [thread:$0]  %s1, 4608, %s27, [#allocation6], 2304, 2304, 144
    $region9: #{_triplets_head_matmul.1} parent=1 // pred_fallthru
      _
    // Predicated region
    $region10: #{_triplets_head_matmul.1} parent=1 // pred_check
      _
    $region11: #{_triplets_head_matmul.1} parent=1 // pred_check_branch
      %34 = sbr.rel (0) target = $region13
    $region12: #{_triplets_head_matmul.1} parent=1 // pred_region
      _
    $region13: #{_triplets_head_matmul.1} parent=1 // pred_fallthru
      _
    // Predicated region
    $region14: #{_triplets_head_matmul.1} parent=1 // pred_check
      _
    $region15: #{_triplets_head_matmul.1} parent=1 // pred_check_branch
      %36 = sbr.rel (0) target = $region17
    $region16: #{_triplets_head_matmul.1} parent=1 // pred_region
      %37 = dma.done [#allocation3], 2304
    $region17: #{_triplets_head_matmul.1} parent=1 // pred_fallthru
      _
    // Predicated region
    $region18: #{_triplets_head_matmul.1} parent=1 // pred_check
      _
    $region19: #{_triplets_head_matmul.1} parent=1 // pred_check_branch
      %39 = sbr.rel (0) target = $region21
    $region20: #{_triplets_head_matmul.1} parent=1 // pred_region
      %40 = dma.done [#allocation6], 4608
    $region21: #{_triplets_head_matmul.1} parent=1 // pred_fallthru
      _
    %v42 = vld [vmem:[#allocation2] sm:$0xff]
    %v43 = vld [vmem:[#allocation2 + $0x8] sm:$0xff]
    %v44 = vld [vmem:[#allocation2 + $0x10] sm:$0xff]
    %v45 = vld [vmem:[#allocation2 + $0x18] sm:$0xff]
    %v46 = vld [vmem:[#allocation2 + $0x20] sm:$0xff]
    %v47 = vld [vmem:[#allocation2 + $0x28] sm:$0xff]
    %v48 = vld [vmem:[#allocation2 + $0x30] sm:$0xff]
    %v49 = vld [vmem:[#allocation2 + $0x38] sm:$0xff]
    %v50 = vld [vmem:[#allocation2 + $0x40] sm:$0xff]
    %v51 = vld [vmem:[#allocation2 + $0x48] sm:$0xff]
    %v52 = vld [vmem:[#allocation2 + $0x50] sm:$0xff]
    %v53 = vld [vmem:[#allocation2 + $0x58] sm:$0xff]
    %v54 = vld [vmem:[#allocation2 + $0x60] sm:$0xff]
    %v55 = vld [vmem:[#allocation2 + $0x68] sm:$0xff]
    %v56 = vld [vmem:[#allocation2 + $0x70] sm:$0xff]
    %v57 = vld [vmem:[#allocation2 + $0x78] sm:$0xff]
    %v58 = vld [vmem:[#allocation2 + $0x80] sm:$0xff]
    %v59 = vld [vmem:[#allocation2 + $0x88] sm:$0xff]
    %v78 = vcombine.high %v42, %v42
    %v79 = vcombine.high %v43, %v43
    %v80 = vcombine.high %v44, %v44
    %v81 = vcombine.high %v45, %v45
    %v82 = vcombine.high %v46, %v46
    %v83 = vcombine.high %v47, %v47
    %v84 = vcombine.high %v48, %v48
    %v85 = vcombine.high %v49, %v49
    %v86 = vcombine.high %v50, %v50
    %v87 = vcombine.high %v51, %v51
    %v88 = vcombine.high %v52, %v52
    %v89 = vcombine.high %v53, %v53
    %v90 = vcombine.high %v54, %v54
    %v91 = vcombine.high %v55, %v55
    %v92 = vcombine.high %v56, %v56
    %v93 = vcombine.high %v57, %v57
    %v94 = vcombine.high %v58, %v58
    %v95 = vcombine.high %v59, %v59
    %v114 = vpack.c.bf16 %v42, %v42
    %v115 = vpack.c.bf16 %v78, %v78
    %v116 = vpack.c.bf16 %v43, %v43
    %v117 = vpack.c.bf16 %v79, %v79
    %v118 = vpack.c.bf16 %v44, %v44
    %v119 = vpack.c.bf16 %v80, %v80
    %v120 = vpack.c.bf16 %v45, %v45
    %v121 = vpack.c.bf16 %v81, %v81
    %v122 = vpack.c.bf16 %v46, %v46
    %v123 = vpack.c.bf16 %v82, %v82
    %v124 = vpack.c.bf16 %v47, %v47
    %v125 = vpack.c.bf16 %v83, %v83
    %v126 = vpack.c.bf16 %v48, %v48
    %v127 = vpack.c.bf16 %v84, %v84
    %v128 = vpack.c.bf16 %v49, %v49
    %v129 = vpack.c.bf16 %v85, %v85
    %v130 = vpack.c.bf16 %v50, %v50
    %v131 = vpack.c.bf16 %v86, %v86
    %v132 = vpack.c.bf16 %v51, %v51
    %v133 = vpack.c.bf16 %v87, %v87
    %v134 = vpack.c.bf16 %v52, %v52
    %v135 = vpack.c.bf16 %v88, %v88
    %v136 = vpack.c.bf16 %v53, %v53
    %v137 = vpack.c.bf16 %v89, %v89
    %v138 = vpack.c.bf16 %v54, %v54
    %v139 = vpack.c.bf16 %v90, %v90
    %v140 = vpack.c.bf16 %v55, %v55
    %v141 = vpack.c.bf16 %v91, %v91
    %v142 = vpack.c.bf16 %v56, %v56
    %v143 = vpack.c.bf16 %v92, %v92
    %v144 = vpack.c.bf16 %v57, %v57
    %v145 = vpack.c.bf16 %v93, %v93
    %v146 = vpack.c.bf16 %v58, %v58
    %v147 = vpack.c.bf16 %v94, %v94
    %v148 = vpack.c.bf16 %v59, %v59
    %v149 = vpack.c.bf16 %v95, %v95
    %v150 = vld [vmem:[#allocation5] sm:$0xff]
    %v151 = vld [vmem:[#allocation5 + $0x8] sm:$0xff]
    %v152 = vld [vmem:[#allocation5 + $0x10] sm:$0xff]
    %v153 = vld [vmem:[#allocation5 + $0x18] sm:$0xff]
    %v154 = vld [vmem:[#allocation5 + $0x20] sm:$0xff]
    %v155 = vld [vmem:[#allocation5 + $0x28] sm:$0xff]
    %v156 = vld [vmem:[#allocation5 + $0x30] sm:$0xff]
    %v157 = vld [vmem:[#allocation5 + $0x38] sm:$0xff]
    %v158 = vld [vmem:[#allocation5 + $0x40] sm:$0xff]
    %v159 = vld [vmem:[#allocation5 + $0x48] sm:$0xff]
    %v160 = vld [vmem:[#allocation5 + $0x50] sm:$0xff]
    %v161 = vld [vmem:[#allocation5 + $0x58] sm:$0xff]
    %v162 = vld [vmem:[#allocation5 + $0x60] sm:$0xff]
    %v163 = vld [vmem:[#allocation5 + $0x68] sm:$0xff]
    %v164 = vld [vmem:[#allocation5 + $0x70] sm:$0xff]
    %v165 = vld [vmem:[#allocation5 + $0x78] sm:$0xff]
    %v166 = vld [vmem:[#allocation5 + $0x80] sm:$0xff]
    %v167 = vld [vmem:[#allocation5 + $0x88] sm:$0xff]
    %v168 = vld [vmem:[#allocation5 + $0x90] sm:$0xff]
    %v169 = vld [vmem:[#allocation5 + $0x98] sm:$0xff]
    %v170 = vld [vmem:[#allocation5 + $0xa0] sm:$0xff]
    %v171 = vld [vmem:[#allocation5 + $0xa8] sm:$0xff]
    %v172 = vld [vmem:[#allocation5 + $0xb0] sm:$0xff]
    %v173 = vld [vmem:[#allocation5 + $0xb8] sm:$0xff]
    %v174 = vld [vmem:[#allocation5 + $0xc0] sm:$0xff]
    %v175 = vld [vmem:[#allocation5 + $0xc8] sm:$0xff]
    %v176 = vld [vmem:[#allocation5 + $0xd0] sm:$0xff]
    %v177 = vld [vmem:[#allocation5 + $0xd8] sm:$0xff]
    %v178 = vld [vmem:[#allocation5 + $0xe0] sm:$0xff]
    %v179 = vld [vmem:[#allocation5 + $0xe8] sm:$0xff]
    %v180 = vld [vmem:[#allocation5 + $0xf0] sm:$0xff]
    %v181 = vld [vmem:[#allocation5 + $0xf8] sm:$0xff]
    %v182 = vld [vmem:[#allocation5 + $0x100] sm:$0xff]
    %v183 = vld [vmem:[#allocation5 + $0x108] sm:$0xff]
    %v184 = vld [vmem:[#allocation5 + $0x110] sm:$0xff]
    %v185 = vld [vmem:[#allocation5 + $0x118] sm:$0xff]
    %v186 = vld [vmem:[%s2] sm:$0x1]
    %v188 = vlaneseq
    %v189 = vshrl.u32 %v188, 7
    %v190 = vsub.s32 0, %v189
    %v191 = vrot.slane %v186, %v190
    %v229 = vunpack.c.l.b16 %v150
    %v230 = vunpack.c.h.b16 %v150
    %v231 = vunpack.c.l.b16 %v151
    %v232 = vunpack.c.h.b16 %v151
    %v233 = vunpack.c.l.b16 %v152
    %v234 = vunpack.c.h.b16 %v152
    %v235 = vunpack.c.l.b16 %v153
    %v236 = vunpack.c.h.b16 %v153
    %v237 = vunpack.c.l.b16 %v154
    %v238 = vunpack.c.h.b16 %v154
    %v239 = vunpack.c.l.b16 %v155
    %v240 = vunpack.c.h.b16 %v155
    %v241 = vunpack.c.l.b16 %v156
    %v242 = vunpack.c.h.b16 %v156
    %v243 = vunpack.c.l.b16 %v157
    %v244 = vunpack.c.h.b16 %v157
    %v245 = vunpack.c.l.b16 %v158
    %v246 = vunpack.c.h.b16 %v158
    %v247 = vunpack.c.l.b16 %v159
    %v248 = vunpack.c.h.b16 %v159
    %v249 = vunpack.c.l.b16 %v160
    %v250 = vunpack.c.h.b16 %v160
    %v251 = vunpack.c.l.b16 %v161
    %v252 = vunpack.c.h.b16 %v161
    %v253 = vunpack.c.l.b16 %v162
    %v254 = vunpack.c.h.b16 %v162
    %v255 = vunpack.c.l.b16 %v163
    %v256 = vunpack.c.h.b16 %v163
    %v257 = vunpack.c.l.b16 %v164
    %v258 = vunpack.c.h.b16 %v164
    %v259 = vunpack.c.l.b16 %v165
    %v260 = vunpack.c.h.b16 %v165
    %v261 = vunpack.c.l.b16 %v166
    %v262 = vunpack.c.h.b16 %v166
    %v263 = vunpack.c.l.b16 %v167
    %v264 = vunpack.c.h.b16 %v167
    %v265 = vunpack.c.l.b16 %v168
    %v266 = vunpack.c.h.b16 %v168
    %v267 = vunpack.c.l.b16 %v169
    %v268 = vunpack.c.h.b16 %v169
    %v269 = vunpack.c.l.b16 %v170
    %v270 = vunpack.c.h.b16 %v170
    %v271 = vunpack.c.l.b16 %v171
    %v272 = vunpack.c.h.b16 %v171
    %v273 = vunpack.c.l.b16 %v172
    %v274 = vunpack.c.h.b16 %v172
    %v275 = vunpack.c.l.b16 %v173
    %v276 = vunpack.c.h.b16 %v173
    %v277 = vunpack.c.l.b16 %v174
    %v278 = vunpack.c.h.b16 %v174
    %v279 = vunpack.c.l.b16 %v175
    %v280 = vunpack.c.h.b16 %v175
    %v281 = vunpack.c.l.b16 %v176
    %v282 = vunpack.c.h.b16 %v176
    %v283 = vunpack.c.l.b16 %v177
    %v284 = vunpack.c.h.b16 %v177
    %v285 = vunpack.c.l.b16 %v178
    %v286 = vunpack.c.h.b16 %v178
    %v287 = vunpack.c.l.b16 %v179
    %v288 = vunpack.c.h.b16 %v179
    %v289 = vunpack.c.l.b16 %v180
    %v290 = vunpack.c.h.b16 %v180
    %v291 = vunpack.c.l.b16 %v181
    %v292 = vunpack.c.h.b16 %v181
    %v293 = vunpack.c.l.b16 %v182
    %v294 = vunpack.c.h.b16 %v182
    %v295 = vunpack.c.l.b16 %v183
    %v296 = vunpack.c.h.b16 %v183
    %v297 = vunpack.c.l.b16 %v184
    %v298 = vunpack.c.h.b16 %v184
    %v299 = vunpack.c.l.b16 %v185
    %v300 = vunpack.c.h.b16 %v185
    %v301 = vpack.c.b16 %v265, %v229
    %v302 = vpack.c.b16 %v266, %v230
    %v303 = vpack.c.b16 %v267, %v231
    %v304 = vpack.c.b16 %v268, %v232
    %v305 = vpack.c.b16 %v269, %v233
    %v306 = vpack.c.b16 %v270, %v234
    %v307 = vpack.c.b16 %v271, %v235
    %v308 = vpack.c.b16 %v272, %v236
    %v309 = vpack.c.b16 %v273, %v237
    %v310 = vpack.c.b16 %v274, %v238
    %v311 = vpack.c.b16 %v275, %v239
    %v312 = vpack.c.b16 %v276, %v240
    %v313 = vpack.c.b16 %v277, %v241
    %v314 = vpack.c.b16 %v278, %v242
    %v315 = vpack.c.b16 %v279, %v243
    %v316 = vpack.c.b16 %v280, %v244
    %v317 = vpack.c.b16 %v281, %v245
    %v318 = vpack.c.b16 %v282, %v246
    %v319 = vpack.c.b16 %v283, %v247
    %v320 = vpack.c.b16 %v284, %v248
    %v321 = vpack.c.b16 %v285, %v249
    %v322 = vpack.c.b16 %v286, %v250
    %v323 = vpack.c.b16 %v287, %v251
    %v324 = vpack.c.b16 %v288, %v252
    %v325 = vpack.c.b16 %v289, %v253
    %v326 = vpack.c.b16 %v290, %v254
    %v327 = vpack.c.b16 %v291, %v255
    %v328 = vpack.c.b16 %v292, %v256
    %v329 = vpack.c.b16 %v293, %v257
    %v330 = vpack.c.b16 %v294, %v258
    %v331 = vpack.c.b16 %v295, %v259
    %v332 = vpack.c.b16 %v296, %v260
    %v333 = vpack.c.b16 %v297, %v261
    %v334 = vpack.c.b16 %v298, %v262
    %v335 = vpack.c.b16 %v299, %v263
    %v336 = vpack.c.b16 %v300, %v264
    %373 = vmatprep.subr.bf16.mxu0 %v302
    %374 = vmatpush1.bf16.xpose.msra.mxu0 %v301
    %375 = vmatprep.subr.bf16.mxu0 0
    %376 = vmatpush1.bf16.xpose.msra.mxu0 0
    %377 = vmatprep.subr.bf16.mxu0 0
    %378 = vmatpush1.bf16.xpose.msra.mxu0 0
    %379 = vmatprep.subr.bf16.mxu0 0
    %380 = vmatpush1.bf16.xpose.msra.mxu0 0
    %381 = vmatprep.subr.bf16.mxu0 0
    %382 = vmatpush1.bf16.xpose.msra.mxu0 0
    %383 = vmatprep.subr.bf16.mxu0 0
    %384 = vmatpush1.bf16.xpose.msra.mxu0 0
    %385 = vmatprep.subr.bf16.mxu0 0
    %386 = vmatpush1.bf16.xpose.msra.mxu0 0
    %387 = vmatprep.subr.bf16.mxu0 0
    %388 = vmatpush1.bf16.xpose.msra.mxu0 0
    %389 = vmatprep.subr.bf16.mxu0 0
    %390 = vmatpush1.bf16.xpose.msra.mxu0 0
    %391 = vmatprep.subr.bf16.mxu0 0
    %392 = vmatpush1.bf16.xpose.msra.mxu0 0
    %393 = vmatprep.subr.bf16.mxu0 0
    %394 = vmatpush1.bf16.xpose.msra.mxu0 0
    %395 = vmatprep.subr.bf16.mxu0 0
    %396 = vmatpush1.bf16.xpose.msra.mxu0 0
    %397 = vmatprep.subr.bf16.mxu0 0
    %398 = vmatpush1.bf16.xpose.msra.mxu0 0
    %399 = vmatprep.subr.bf16.mxu0 0
    %400 = vmatpush1.bf16.xpose.msra.mxu0 0
    %401 = vmatprep.subr.bf16.mxu0 0
    %402 = vmatpush1.bf16.xpose.msra.mxu0 0
    %403 = vmatprep.subr.bf16.mxu0 0
    %404 = vmatpush1.bf16.xpose.msra.mxu0 0
    %405 = vmatprep.mubr.bf16.mxu0 %v115
    %406 = vmatmul.mubr.bf16.gmra.mrb[0].mxu0 %v114
    %v407 = vpop.f32.mrb[0].mxu0
    %v408 = vadd.f32 %v191, %v407
    %v409 = vpop.f32.mrb[0].mxu0
    %v410 = vpop.f32.mrb[0].mxu0
    %v411 = vpop.f32.mrb[0].mxu0
    %412 = vdwg.mxu0
    %413 = vmatprep.subr.bf16.mxu0 %v304
    %414 = vmatpush1.bf16.xpose.msra.mxu0 %v303
    %415 = vmatprep.subr.bf16.mxu0 0
    %416 = vmatpush1.bf16.xpose.msra.mxu0 0
    %417 = vmatprep.subr.bf16.mxu0 0
    %418 = vmatpush1.bf16.xpose.msra.mxu0 0
    %419 = vmatprep.subr.bf16.mxu0 0
    %420 = vmatpush1.bf16.xpose.msra.mxu0 0
    %421 = vmatprep.subr.bf16.mxu0 0
    %422 = vmatpush1.bf16.xpose.msra.mxu0 0
    %423 = vmatprep.subr.bf16.mxu0 0
    %424 = vmatpush1.bf16.xpose.msra.mxu0 0
    %425 = vmatprep.subr.bf16.mxu0 0
    %426 = vmatpush1.bf16.xpose.msra.mxu0 0
    %427 = vmatprep.subr.bf16.mxu0 0
    %428 = vmatpush1.bf16.xpose.msra.mxu0 0
    %429 = vmatprep.subr.bf16.mxu0 0
    %430 = vmatpush1.bf16.xpose.msra.mxu0 0
    %431 = vmatprep.subr.bf16.mxu0 0
    %432 = vmatpush1.bf16.xpose.msra.mxu0 0
    %433 = vmatprep.subr.bf16.mxu0 0
    %434 = vmatpush1.bf16.xpose.msra.mxu0 0
    %435 = vmatprep.subr.bf16.mxu0 0
    %436 = vmatpush1.bf16.xpose.msra.mxu0 0
    %437 = vmatprep.subr.bf16.mxu0 0
    %438 = vmatpush1.bf16.xpose.msra.mxu0 0
    %439 = vmatprep.subr.bf16.mxu0 0
    %440 = vmatpush1.bf16.xpose.msra.mxu0 0
    %441 = vmatprep.subr.bf16.mxu0 0
    %442 = vmatpush1.bf16.xpose.msra.mxu0 0
    %443 = vmatprep.subr.bf16.mxu0 0
    %444 = vmatpush1.bf16.xpose.msra.mxu0 0
    %445 = vmatprep.mubr.bf16.mxu0 %v117
    %446 = vmatmul.mubr.bf16.gmra.mrb[0].mxu0 %v116
    %v447 = vpop.f32.mrb[0].mxu0
    %v448 = vadd.f32 %v408, %v447
    %v449 = vpop.f32.mrb[0].mxu0
    %v450 = vpop.f32.mrb[0].mxu0
    %v451 = vpop.f32.mrb[0].mxu0
    %452 = vdwg.mxu0
    %453 = vmatprep.subr.bf16.mxu0 %v306
    %454 = vmatpush1.bf16.xpose.msra.mxu0 %v305
    %455 = vmatprep.subr.bf16.mxu0 0
    %456 = vmatpush1.bf16.xpose.msra.mxu0 0
    %457 = vmatprep.subr.bf16.mxu0 0
    %458 = vmatpush1.bf16.xpose.msra.mxu0 0
    %459 = vmatprep.subr.bf16.mxu0 0
    %460 = vmatpush1.bf16.xpose.msra.mxu0 0
    %461 = vmatprep.subr.bf16.mxu0 0
    %462 = vmatpush1.bf16.xpose.msra.mxu0 0
    %463 = vmatprep.subr.bf16.mxu0 0
    %464 = vmatpush1.bf16.xpose.msra.mxu0 0
    %465 = vmatprep.subr.bf16.mxu0 0
    %466 = vmatpush1.bf16.xpose.msra.mxu0 0
    %467 = vmatprep.subr.bf16.mxu0 0
    %468 = vmatpush1.bf16.xpose.msra.mxu0 0
    %469 = vmatprep.subr.bf16.mxu0 0
    %470 = vmatpush1.bf16.xpose.msra.mxu0 0
    %471 = vmatprep.subr.bf16.mxu0 0
    %472 = vmatpush1.bf16.xpose.msra.mxu0 0
    %473 = vmatprep.subr.bf16.mxu0 0
    %474 = vmatpush1.bf16.xpose.msra.mxu0 0
    %475 = vmatprep.subr.bf16.mxu0 0
    %476 = vmatpush1.bf16.xpose.msra.mxu0 0
    %477 = vmatprep.subr.bf16.mxu0 0
    %478 = vmatpush1.bf16.xpose.msra.mxu0 0
    %479 = vmatprep.subr.bf16.mxu0 0
    %480 = vmatpush1.bf16.xpose.msra.mxu0 0
    %481 = vmatprep.subr.bf16.mxu0 0
    %482 = vmatpush1.bf16.xpose.msra.mxu0 0
    %483 = vmatprep.subr.bf16.mxu0 0
    %484 = vmatpush1.bf16.xpose.msra.mxu0 0
    %485 = vmatprep.mubr.bf16.mxu0 %v119
    %486 = vmatmul.mubr.bf16.gmra.mrb[0].mxu0 %v118
    %v487 = vpop.f32.mrb[0].mxu0
    %v488 = vadd.f32 %v448, %v487
    %v489 = vpop.f32.mrb[0].mxu0
    %v490 = vpop.f32.mrb[0].mxu0
    %v491 = vpop.f32.mrb[0].mxu0
    %492 = vdwg.mxu0
    %493 = vmatprep.subr.bf16.mxu0 %v308
    %494 = vmatpush1.bf16.xpose.msra.mxu0 %v307
    %495 = vmatprep.subr.bf16.mxu0 0
    %496 = vmatpush1.bf16.xpose.msra.mxu0 0
    %497 = vmatprep.subr.bf16.mxu0 0
    %498 = vmatpush1.bf16.xpose.msra.mxu0 0
    %499 = vmatprep.subr.bf16.mxu0 0
    %500 = vmatpush1.bf16.xpose.msra.mxu0 0
    %501 = vmatprep.subr.bf16.mxu0 0
    %502 = vmatpush1.bf16.xpose.msra.mxu0 0
    %503 = vmatprep.subr.bf16.mxu0 0
    %504 = vmatpush1.bf16.xpose.msra.mxu0 0
    %505 = vmatprep.subr.bf16.mxu0 0
    %506 = vmatpush1.bf16.xpose.msra.mxu0 0
    %507 = vmatprep.subr.bf16.mxu0 0
    %508 = vmatpush1.bf16.xpose.msra.mxu0 0
    %509 = vmatprep.subr.bf16.mxu0 0
    %510 = vmatpush1.bf16.xpose.msra.mxu0 0
    %511 = vmatprep.subr.bf16.mxu0 0
    %512 = vmatpush1.bf16.xpose.msra.mxu0 0
    %513 = vmatprep.subr.bf16.mxu0 0
    %514 = vmatpush1.bf16.xpose.msra.mxu0 0
    %515 = vmatprep.subr.bf16.mxu0 0
    %516 = vmatpush1.bf16.xpose.msra.mxu0 0
    %517 = vmatprep.subr.bf16.mxu0 0
    %518 = vmatpush1.bf16.xpose.msra.mxu0 0
    %519 = vmatprep.subr.bf16.mxu0 0
    %520 = vmatpush1.bf16.xpose.msra.mxu0 0
    %521 = vmatprep.subr.bf16.mxu0 0
    %522 = vmatpush1.bf16.xpose.msra.mxu0 0
    %523 = vmatprep.subr.bf16.mxu0 0
    %524 = vmatpush1.bf16.xpose.msra.mxu0 0
    %525 = vmatprep.mubr.bf16.mxu0 %v121
    %526 = vmatmul.mubr.bf16.gmra.mrb[0].mxu0 %v120
    %v527 = vpop.f32.mrb[0].mxu0
    %v528 = vadd.f32 %v488, %v527
    %v529 = vpop.f32.mrb[0].mxu0
    %v530 = vpop.f32.mrb[0].mxu0
    %v531 = vpop.f32.mrb[0].mxu0
    %532 = vdwg.mxu0
    %533 = vmatprep.subr.bf16.mxu0 %v310
    %534 = vmatpush1.bf16.xpose.msra.mxu0 %v309
    %535 = vmatprep.subr.bf16.mxu0 0
    %536 = vmatpush1.bf16.xpose.msra.mxu0 0
    %537 = vmatprep.subr.bf16.mxu0 0
    %538 = vmatpush1.bf16.xpose.msra.mxu0 0
    %539 = vmatprep.subr.bf16.mxu0 0
    %540 = vmatpush1.bf16.xpose.msra.mxu0 0
    %541 = vmatprep.subr.bf16.mxu0 0
    %542 = vmatpush1.bf16.xpose.msra.mxu0 0
    %543 = vmatprep.subr.bf16.mxu0 0
    %544 = vmatpush1.bf16.xpose.msra.mxu0 0
    %545 = vmatprep.subr.bf16.mxu0 0
    %546 = vmatpush1.bf16.xpose.msra.mxu0 0
    %547 = vmatprep.subr.bf16.mxu0 0
    %548 = vmatpush1.bf16.xpose.msra.mxu0 0
    %549 = vmatprep.subr.bf16.mxu0 0
    %550 = vmatpush1.bf16.xpose.msra.mxu0 0
    %551 = vmatprep.subr.bf16.mxu0 0
    %552 = vmatpush1.bf16.xpose.msra.mxu0 0
    %553 = vmatprep.subr.bf16.mxu0 0
    %554 = vmatpush1.bf16.xpose.msra.mxu0 0
    %555 = vmatprep.subr.bf16.mxu0 0
    %556 = vmatpush1.bf16.xpose.msra.mxu0 0
    %557 = vmatprep.subr.bf16.mxu0 0
    %558 = vmatpush1.bf16.xpose.msra.mxu0 0
    %559 = vmatprep.subr.bf16.mxu0 0
    %560 = vmatpush1.bf16.xpose.msra.mxu0 0
    %561 = vmatprep.subr.bf16.mxu0 0
    %562 = vmatpush1.bf16.xpose.msra.mxu0 0
    %563 = vmatprep.subr.bf16.mxu0 0
    %564 = vmatpush1.bf16.xpose.msra.mxu0 0
    %565 = vmatprep.mubr.bf16.mxu0 %v123
    %566 = vmatmul.mubr.bf16.gmra.mrb[0].mxu0 %v122
    %v567 = vpop.f32.mrb[0].mxu0
    %v568 = vadd.f32 %v528, %v567
    %v569 = vpop.f32.mrb[0].mxu0
    %v570 = vpop.f32.mrb[0].mxu0
    %v571 = vpop.f32.mrb[0].mxu0
    %572 = vdwg.mxu0
    %573 = vmatprep.subr.bf16.mxu0 %v312
    %574 = vmatpush1.bf16.xpose.msra.mxu0 %v311
    %575 = vmatprep.subr.bf16.mxu0 0
    %576 = vmatpush1.bf16.xpose.msra.mxu0 0
    %577 = vmatprep.subr.bf16.mxu0 0
    %578 = vmatpush1.bf16.xpose.msra.mxu0 0
    %579 = vmatprep.subr.bf16.mxu0 0
    %580 = vmatpush1.bf16.xpose.msra.mxu0 0
    %581 = vmatprep.subr.bf16.mxu0 0
    %582 = vmatpush1.bf16.xpose.msra.mxu0 0
    %583 = vmatprep.subr.bf16.mxu0 0
    %584 = vmatpush1.bf16.xpose.msra.mxu0 0
    %585 = vmatprep.subr.bf16.mxu0 0
    %586 = vmatpush1.bf16.xpose.msra.mxu0 0
    %587 = vmatprep.subr.bf16.mxu0 0
    %588 = vmatpush1.bf16.xpose.msra.mxu0 0
    %589 = vmatprep.subr.bf16.mxu0 0
    %590 = vmatpush1.bf16.xpose.msra.mxu0 0
    %591 = vmatprep.subr.bf16.mxu0 0
    %592 = vmatpush1.bf16.xpose.msra.mxu0 0
    %593 = vmatprep.subr.bf16.mxu0 0
    %594 = vmatpush1.bf16.xpose.msra.mxu0 0
    %595 = vmatprep.subr.bf16.mxu0 0
    %596 = vmatpush1.bf16.xpose.msra.mxu0 0
    %597 = vmatprep.subr.bf16.mxu0 0
    %598 = vmatpush1.bf16.xpose.msra.mxu0 0
    %599 = vmatprep.subr.bf16.mxu0 0
    %600 = vmatpush1.bf16.xpose.msra.mxu0 0
    %601 = vmatprep.subr.bf16.mxu0 0
    %602 = vmatpush1.bf16.xpose.msra.mxu0 0
    %603 = vmatprep.subr.bf16.mxu0 0
    %604 = vmatpush1.bf16.xpose.msra.mxu0 0
    %605 = vmatprep.mubr.bf16.mxu0 %v125
    %606 = vmatmul.mubr.bf16.gmra.mrb[0].mxu0 %v124
    %v607 = vpop.f32.mrb[0].mxu0
    %v608 = vadd.f32 %v568, %v607
    %v609 = vpop.f32.mrb[0].mxu0
    %v610 = vpop.f32.mrb[0].mxu0
    %v611 = vpop.f32.mrb[0].mxu0
    %612 = vdwg.mxu0
    %613 = vmatprep.subr.bf16.mxu0 %v314
    %614 = vmatpush1.bf16.xpose.msra.mxu0 %v313
    %615 = vmatprep.subr.bf16.mxu0 0
    %616 = vmatpush1.bf16.xpose.msra.mxu0 0
    %617 = vmatprep.subr.bf16.mxu0 0
    %618 = vmatpush1.bf16.xpose.msra.mxu0 0
    %619 = vmatprep.subr.bf16.mxu0 0
    %620 = vmatpush1.bf16.xpose.msra.mxu0 0
    %621 = vmatprep.subr.bf16.mxu0 0
    %622 = vmatpush1.bf16.xpose.msra.mxu0 0
    %623 = vmatprep.subr.bf16.mxu0 0
    %624 = vmatpush1.bf16.xpose.msra.mxu0 0
    %625 = vmatprep.subr.bf16.mxu0 0
    %626 = vmatpush1.bf16.xpose.msra.mxu0 0
    %627 = vmatprep.subr.bf16.mxu0 0
    %628 = vmatpush1.bf16.xpose.msra.mxu0 0
    %629 = vmatprep.subr.bf16.mxu0 0
    %630 = vmatpush1.bf16.xpose.msra.mxu0 0
    %631 = vmatprep.subr.bf16.mxu0 0
    %632 = vmatpush1.bf16.xpose.msra.mxu0 0
    %633 = vmatprep.subr.bf16.mxu0 0
    %634 = vmatpush1.bf16.xpose.msra.mxu0 0
    %635 = vmatprep.subr.bf16.mxu0 0
    %636 = vmatpush1.bf16.xpose.msra.mxu0 0
    %637 = vmatprep.subr.bf16.mxu0 0
    %638 = vmatpush1.bf16.xpose.msra.mxu0 0
    %639 = vmatprep.subr.bf16.mxu0 0
    %640 = vmatpush1.bf16.xpose.msra.mxu0 0
    %641 = vmatprep.subr.bf16.mxu0 0
    %642 = vmatpush1.bf16.xpose.msra.mxu0 0
    %643 = vmatprep.subr.bf16.mxu0 0
    %644 = vmatpush1.bf16.xpose.msra.mxu0 0
    %645 = vmatprep.mubr.bf16.mxu0 %v127
    %646 = vmatmul.mubr.bf16.gmra.mrb[0].mxu0 %v126
    %v647 = vpop.f32.mrb[0].mxu0
    %v648 = vadd.f32 %v608, %v647
    %v649 = vpop.f32.mrb[0].mxu0
    %v650 = vpop.f32.mrb[0].mxu0
    %v651 = vpop.f32.mrb[0].mxu0
    %652 = vdwg.mxu0
    %653 = vmatprep.subr.bf16.mxu0 %v316
    %654 = vmatpush1.bf16.xpose.msra.mxu0 %v315
    %655 = vmatprep.subr.bf16.mxu0 0
    %656 = vmatpush1.bf16.xpose.msra.mxu0 0
    %657 = vmatprep.subr.bf16.mxu0 0
    %658 = vmatpush1.bf16.xpose.msra.mxu0 0
    %659 = vmatprep.subr.bf16.mxu0 0
    %660 = vmatpush1.bf16.xpose.msra.mxu0 0
    %661 = vmatprep.subr.bf16.mxu0 0
    %662 = vmatpush1.bf16.xpose.msra.mxu0 0
    %663 = vmatprep.subr.bf16.mxu0 0
    %664 = vmatpush1.bf16.xpose.msra.mxu0 0
    %665 = vmatprep.subr.bf16.mxu0 0
    %666 = vmatpush1.bf16.xpose.msra.mxu0 0
    %667 = vmatprep.subr.bf16.mxu0 0
    %668 = vmatpush1.bf16.xpose.msra.mxu0 0
    %669 = vmatprep.subr.bf16.mxu0 0
    %670 = vmatpush1.bf16.xpose.msra.mxu0 0
    %671 = vmatprep.subr.bf16.mxu0 0
    %672 = vmatpush1.bf16.xpose.msra.mxu0 0
    %673 = vmatprep.subr.bf16.mxu0 0
    %674 = vmatpush1.bf16.xpose.msra.mxu0 0
    %675 = vmatprep.subr.bf16.mxu0 0
    %676 = vmatpush1.bf16.xpose.msra.mxu0 0
    %677 = vmatprep.subr.bf16.mxu0 0
    %678 = vmatpush1.bf16.xpose.msra.mxu0 0
    %679 = vmatprep.subr.bf16.mxu0 0
    %680 = vmatpush1.bf16.xpose.msra.mxu0 0
    %681 = vmatprep.subr.bf16.mxu0 0
    %682 = vmatpush1.bf16.xpose.msra.mxu0 0
    %683 = vmatprep.subr.bf16.mxu0 0
    %684 = vmatpush1.bf16.xpose.msra.mxu0 0
    %685 = vmatprep.mubr.bf16.mxu0 %v129
    %686 = vmatmul.mubr.bf16.gmra.mrb[0].mxu0 %v128
    %v687 = vpop.f32.mrb[0].mxu0
    %v688 = vadd.f32 %v648, %v687
    %v689 = vpop.f32.mrb[0].mxu0
    %v690 = vpop.f32.mrb[0].mxu0
    %v691 = vpop.f32.mrb[0].mxu0
    %692 = vdwg.mxu0
    %693 = vmatprep.subr.bf16.mxu0 %v318
    %694 = vmatpush1.bf16.xpose.msra.mxu0 %v317
    %695 = vmatprep.subr.bf16.mxu0 0
    %696 = vmatpush1.bf16.xpose.msra.mxu0 0
    %697 = vmatprep.subr.bf16.mxu0 0
    %698 = vmatpush1.bf16.xpose.msra.mxu0 0
    %699 = vmatprep.subr.bf16.mxu0 0
    %700 = vmatpush1.bf16.xpose.msra.mxu0 0
    %701 = vmatprep.subr.bf16.mxu0 0
    %702 = vmatpush1.bf16.xpose.msra.mxu0 0
    %703 = vmatprep.subr.bf16.mxu0 0
    %704 = vmatpush1.bf16.xpose.msra.mxu0 0
    %705 = vmatprep.subr.bf16.mxu0 0
    %706 = vmatpush1.bf16.xpose.msra.mxu0 0
    %707 = vmatprep.subr.bf16.mxu0 0
    %708 = vmatpush1.bf16.xpose.msra.mxu0 0
    %709 = vmatprep.subr.bf16.mxu0 0
    %710 = vmatpush1.bf16.xpose.msra.mxu0 0
    %711 = vmatprep.subr.bf16.mxu0 0
    %712 = vmatpush1.bf16.xpose.msra.mxu0 0
    %713 = vmatprep.subr.bf16.mxu0 0
    %714 = vmatpush1.bf16.xpose.msra.mxu0 0
    %715 = vmatprep.subr.bf16.mxu0 0
    %716 = vmatpush1.bf16.xpose.msra.mxu0 0
    %717 = vmatprep.subr.bf16.mxu0 0
    %718 = vmatpush1.bf16.xpose.msra.mxu0 0
    %719 = vmatprep.subr.bf16.mxu0 0
    %720 = vmatpush1.bf16.xpose.msra.mxu0 0
    %721 = vmatprep.subr.bf16.mxu0 0
    %722 = vmatpush1.bf16.xpose.msra.mxu0 0
    %723 = vmatprep.subr.bf16.mxu0 0
    %724 = vmatpush1.bf16.xpose.msra.mxu0 0
    %725 = vmatprep.mubr.bf16.mxu0 %v131
    %726 = vmatmul.mubr.bf16.gmra.mrb[0].mxu0 %v130
    %v727 = vpop.f32.mrb[0].mxu0
    %v728 = vadd.f32 %v688, %v727
    %v729 = vpop.f32.mrb[0].mxu0
    %v730 = vpop.f32.mrb[0].mxu0
    %v731 = vpop.f32.mrb[0].mxu0
    %732 = vdwg.mxu0
    %733 = vmatprep.subr.bf16.mxu0 %v320
    %734 = vmatpush1.bf16.xpose.msra.mxu0 %v319
    %735 = vmatprep.subr.bf16.mxu0 0
    %736 = vmatpush1.bf16.xpose.msra.mxu0 0
    %737 = vmatprep.subr.bf16.mxu0 0
    %738 = vmatpush1.bf16.xpose.msra.mxu0 0
    %739 = vmatprep.subr.bf16.mxu0 0
    %740 = vmatpush1.bf16.xpose.msra.mxu0 0
    %741 = vmatprep.subr.bf16.mxu0 0
    %742 = vmatpush1.bf16.xpose.msra.mxu0 0
    %743 = vmatprep.subr.bf16.mxu0 0
    %744 = vmatpush1.bf16.xpose.msra.mxu0 0
    %745 = vmatprep.subr.bf16.mxu0 0
    %746 = vmatpush1.bf16.xpose.msra.mxu0 0
    %747 = vmatprep.subr.bf16.mxu0 0
    %748 = vmatpush1.bf16.xpose.msra.mxu0 0
    %749 = vmatprep.subr.bf16.mxu0 0
    %750 = vmatpush1.bf16.xpose.msra.mxu0 0
    %751 = vmatprep.subr.bf16.mxu0 0
    %752 = vmatpush1.bf16.xpose.msra.mxu0 0
    %753 = vmatprep.subr.bf16.mxu0 0
    %754 = vmatpush1.bf16.xpose.msra.mxu0 0
    %755 = vmatprep.subr.bf16.mxu0 0
    %756 = vmatpush1.bf16.xpose.msra.mxu0 0
    %757 = vmatprep.subr.bf16.mxu0 0
    %758 = vmatpush1.bf16.xpose.msra.mxu0 0
    %759 = vmatprep.subr.bf16.mxu0 0
    %760 = vmatpush1.bf16.xpose.msra.mxu0 0
    %761 = vmatprep.subr.bf16.mxu0 0
    %762 = vmatpush1.bf16.xpose.msra.mxu0 0
    %763 = vmatprep.subr.bf16.mxu0 0
    %764 = vmatpush1.bf16.xpose.msra.mxu0 0
    %765 = vmatprep.mubr.bf16.mxu0 %v133
    %766 = vmatmul.mubr.bf16.gmra.mrb[0].mxu0 %v132
    %v767 = vpop.f32.mrb[0].mxu0
    %v768 = vadd.f32 %v728, %v767
    %v769 = vpop.f32.mrb[0].mxu0
    %v770 = vpop.f32.mrb[0].mxu0
    %v771 = vpop.f32.mrb[0].mxu0
    %772 = vdwg.mxu0
    %773 = vmatprep.subr.bf16.mxu0 %v322
    %774 = vmatpush1.bf16.xpose.msra.mxu0 %v321
    %775 = vmatprep.subr.bf16.mxu0 0
    %776 = vmatpush1.bf16.xpose.msra.mxu0 0
    %777 = vmatprep.subr.bf16.mxu0 0
    %778 = vmatpush1.bf16.xpose.msra.mxu0 0
    %779 = vmatprep.subr.bf16.mxu0 0
    %780 = vmatpush1.bf16.xpose.msra.mxu0 0
    %781 = vmatprep.subr.bf16.mxu0 0
    %782 = vmatpush1.bf16.xpose.msra.mxu0 0
    %783 = vmatprep.subr.bf16.mxu0 0
    %784 = vmatpush1.bf16.xpose.msra.mxu0 0
    %785 = vmatprep.subr.bf16.mxu0 0
    %786 = vmatpush1.bf16.xpose.msra.mxu0 0
    %787 = vmatprep.subr.bf16.mxu0 0
    %788 = vmatpush1.bf16.xpose.msra.mxu0 0
    %789 = vmatprep.subr.bf16.mxu0 0
    %790 = vmatpush1.bf16.xpose.msra.mxu0 0
    %791 = vmatprep.subr.bf16.mxu0 0
    %792 = vmatpush1.bf16.xpose.msra.mxu0 0
    %793 = vmatprep.subr.bf16.mxu0 0
    %794 = vmatpush1.bf16.xpose.msra.mxu0 0
    %795 = vmatprep.subr.bf16.mxu0 0
    %796 = vmatpush1.bf16.xpose.msra.mxu0 0
    %797 = vmatprep.subr.bf16.mxu0 0
    %798 = vmatpush1.bf16.xpose.msra.mxu0 0
    %799 = vmatprep.subr.bf16.mxu0 0
    %800 = vmatpush1.bf16.xpose.msra.mxu0 0
    %801 = vmatprep.subr.bf16.mxu0 0
    %802 = vmatpush1.bf16.xpose.msra.mxu0 0
    %803 = vmatprep.subr.bf16.mxu0 0
    %804 = vmatpush1.bf16.xpose.msra.mxu0 0
    %805 = vmatprep.mubr.bf16.mxu0 %v135
    %806 = vmatmul.mubr.bf16.gmra.mrb[0].mxu0 %v134
    %v807 = vpop.f32.mrb[0].mxu0
    %v808 = vadd.f32 %v768, %v807
    %v809 = vpop.f32.mrb[0].mxu0
    %v810 = vpop.f32.mrb[0].mxu0
    %v811 = vpop.f32.mrb[0].mxu0
    %812 = vdwg.mxu0
    %813 = vmatprep.subr.bf16.mxu0 %v324
    %814 = vmatpush1.bf16.xpose.msra.mxu0 %v323
    %815 = vmatprep.subr.bf16.mxu0 0
    %816 = vmatpush1.bf16.xpose.msra.mxu0 0
    %817 = vmatprep.subr.bf16.mxu0 0
    %818 = vmatpush1.bf16.xpose.msra.mxu0 0
    %819 = vmatprep.subr.bf16.mxu0 0
    %820 = vmatpush1.bf16.xpose.msra.mxu0 0
    %821 = vmatprep.subr.bf16.mxu0 0
    %822 = vmatpush1.bf16.xpose.msra.mxu0 0
    %823 = vmatprep.subr.bf16.mxu0 0
    %824 = vmatpush1.bf16.xpose.msra.mxu0 0
    %825 = vmatprep.subr.bf16.mxu0 0
    %826 = vmatpush1.bf16.xpose.msra.mxu0 0
    %827 = vmatprep.subr.bf16.mxu0 0
    %828 = vmatpush1.bf16.xpose.msra.mxu0 0
    %829 = vmatprep.subr.bf16.mxu0 0
    %830 = vmatpush1.bf16.xpose.msra.mxu0 0
    %831 = vmatprep.subr.bf16.mxu0 0
    %832 = vmatpush1.bf16.xpose.msra.mxu0 0
    %833 = vmatprep.subr.bf16.mxu0 0
    %834 = vmatpush1.bf16.xpose.msra.mxu0 0
    %835 = vmatprep.subr.bf16.mxu0 0
    %836 = vmatpush1.bf16.xpose.msra.mxu0 0
    %837 = vmatprep.subr.bf16.mxu0 0
    %838 = vmatpush1.bf16.xpose.msra.mxu0 0
    %839 = vmatprep.subr.bf16.mxu0 0
    %840 = vmatpush1.bf16.xpose.msra.mxu0 0
    %841 = vmatprep.subr.bf16.mxu0 0
    %842 = vmatpush1.bf16.xpose.msra.mxu0 0
    %843 = vmatprep.subr.bf16.mxu0 0
    %844 = vmatpush1.bf16.xpose.msra.mxu0 0
    %845 = vmatprep.mubr.bf16.mxu0 %v137
    %846 = vmatmul.mubr.bf16.gmra.mrb[0].mxu0 %v136
    %v847 = vpop.f32.mrb[0].mxu0
    %v848 = vadd.f32 %v808, %v847
    %v849 = vpop.f32.mrb[0].mxu0
    %v850 = vpop.f32.mrb[0].mxu0
    %v851 = vpop.f32.mrb[0].mxu0
    %852 = vdwg.mxu0
    %853 = vmatprep.subr.bf16.mxu0 %v326
    %854 = vmatpush1.bf16.xpose.msra.mxu0 %v325
    %855 = vmatprep.subr.bf16.mxu0 0
    %856 = vmatpush1.bf16.xpose.msra.mxu0 0
    %857 = vmatprep.subr.bf16.mxu0 0
    %858 = vmatpush1.bf16.xpose.msra.mxu0 0
    %859 = vmatprep.subr.bf16.mxu0 0
    %860 = vmatpush1.bf16.xpose.msra.mxu0 0
    %861 = vmatprep.subr.bf16.mxu0 0
    %862 = vmatpush1.bf16.xpose.msra.mxu0 0
    %863 = vmatprep.subr.bf16.mxu0 0
    %864 = vmatpush1.bf16.xpose.msra.mxu0 0
    %865 = vmatprep.subr.bf16.mxu0 0
    %866 = vmatpush1.bf16.xpose.msra.mxu0 0
    %867 = vmatprep.subr.bf16.mxu0 0
    %868 = vmatpush1.bf16.xpose.msra.mxu0 0
    %869 = vmatprep.subr.bf16.mxu0 0
    %870 = vmatpush1.bf16.xpose.msra.mxu0 0
    %871 = vmatprep.subr.bf16.mxu0 0
    %872 = vmatpush1.bf16.xpose.msra.mxu0 0
    %873 = vmatprep.subr.bf16.mxu0 0
    %874 = vmatpush1.bf16.xpose.msra.mxu0 0
    %875 = vmatprep.subr.bf16.mxu0 0
    %876 = vmatpush1.bf16.xpose.msra.mxu0 0
    %877 = vmatprep.subr.bf16.mxu0 0
    %878 = vmatpush1.bf16.xpose.msra.mxu0 0
    %879 = vmatprep.subr.bf16.mxu0 0
    %880 = vmatpush1.bf16.xpose.msra.mxu0 0
    %881 = vmatprep.subr.bf16.mxu0 0
    %882 = vmatpush1.bf16.xpose.msra.mxu0 0
    %883 = vmatprep.subr.bf16.mxu0 0
    %884 = vmatpush1.bf16.xpose.msra.mxu0 0
    %885 = vmatprep.mubr.bf16.mxu0 %v139
    %886 = vmatmul.mubr.bf16.gmra.mrb[0].mxu0 %v138
    %v887 = vpop.f32.mrb[0].mxu0
    %v888 = vadd.f32 %v848, %v887
    %v889 = vpop.f32.mrb[0].mxu0
    %v890 = vpop.f32.mrb[0].mxu0
    %v891 = vpop.f32.mrb[0].mxu0
    %892 = vdwg.mxu0
    %893 = vmatprep.subr.bf16.mxu0 %v328
    %894 = vmatpush1.bf16.xpose.msra.mxu0 %v327
    %895 = vmatprep.subr.bf16.mxu0 0
    %896 = vmatpush1.bf16.xpose.msra.mxu0 0
    %897 = vmatprep.subr.bf16.mxu0 0
    %898 = vmatpush1.bf16.xpose.msra.mxu0 0
    %899 = vmatprep.subr.bf16.mxu0 0
    %900 = vmatpush1.bf16.xpose.msra.mxu0 0
    %901 = vmatprep.subr.bf16.mxu0 0
    %902 = vmatpush1.bf16.xpose.msra.mxu0 0
    %903 = vmatprep.subr.bf16.mxu0 0
    %904 = vmatpush1.bf16.xpose.msra.mxu0 0
    %905 = vmatprep.subr.bf16.mxu0 0
    %906 = vmatpush1.bf16.xpose.msra.mxu0 0
    %907 = vmatprep.subr.bf16.mxu0 0
    %908 = vmatpush1.bf16.xpose.msra.mxu0 0
    %909 = vmatprep.subr.bf16.mxu0 0
    %910 = vmatpush1.bf16.xpose.msra.mxu0 0
    %911 = vmatprep.subr.bf16.mxu0 0
    %912 = vmatpush1.bf16.xpose.msra.mxu0 0
    %913 = vmatprep.subr.bf16.mxu0 0
    %914 = vmatpush1.bf16.xpose.msra.mxu0 0
    %915 = vmatprep.subr.bf16.mxu0 0
    %916 = vmatpush1.bf16.xpose.msra.mxu0 0
    %917 = vmatprep.subr.bf16.mxu0 0
    %918 = vmatpush1.bf16.xpose.msra.mxu0 0
    %919 = vmatprep.subr.bf16.mxu0 0
    %920 = vmatpush1.bf16.xpose.msra.mxu0 0
    %921 = vmatprep.subr.bf16.mxu0 0
    %922 = vmatpush1.bf16.xpose.msra.mxu0 0
    %923 = vmatprep.subr.bf16.mxu0 0
    %924 = vmatpush1.bf16.xpose.msra.mxu0 0
    %925 = vmatprep.mubr.bf16.mxu0 %v141
    %926 = vmatmul.mubr.bf16.gmra.mrb[0].mxu0 %v140
    %v927 = vpop.f32.mrb[0].mxu0
    %v928 = vadd.f32 %v888, %v927
    %v929 = vpop.f32.mrb[0].mxu0
    %v930 = vpop.f32.mrb[0].mxu0
    %v931 = vpop.f32.mrb[0].mxu0
    %932 = vdwg.mxu0
    %933 = vmatprep.subr.bf16.mxu0 %v330
    %934 = vmatpush1.bf16.xpose.msra.mxu0 %v329
    %935 = vmatprep.subr.bf16.mxu0 0
    %936 = vmatpush1.bf16.xpose.msra.mxu0 0
    %937 = vmatprep.subr.bf16.mxu0 0
    %938 = vmatpush1.bf16.xpose.msra.mxu0 0
    %939 = vmatprep.subr.bf16.mxu0 0
    %940 = vmatpush1.bf16.xpose.msra.mxu0 0
    %941 = vmatprep.subr.bf16.mxu0 0
    %942 = vmatpush1.bf16.xpose.msra.mxu0 0
    %943 = vmatprep.subr.bf16.mxu0 0
    %944 = vmatpush1.bf16.xpose.msra.mxu0 0
    %945 = vmatprep.subr.bf16.mxu0 0
    %946 = vmatpush1.bf16.xpose.msra.mxu0 0
    %947 = vmatprep.subr.bf16.mxu0 0
    %948 = vmatpush1.bf16.xpose.msra.mxu0 0
    %949 = vmatprep.subr.bf16.mxu0 0
    %950 = vmatpush1.bf16.xpose.msra.mxu0 0
    %951 = vmatprep.subr.bf16.mxu0 0
    %952 = vmatpush1.bf16.xpose.msra.mxu0 0
    %953 = vmatprep.subr.bf16.mxu0 0
    %954 = vmatpush1.bf16.xpose.msra.mxu0 0
    %955 = vmatprep.subr.bf16.mxu0 0
    %956 = vmatpush1.bf16.xpose.msra.mxu0 0
    %957 = vmatprep.subr.bf16.mxu0 0
    %958 = vmatpush1.bf16.xpose.msra.mxu0 0
    %959 = vmatprep.subr.bf16.mxu0 0
    %960 = vmatpush1.bf16.xpose.msra.mxu0 0
    %961 = vmatprep.subr.bf16.mxu0 0
    %962 = vmatpush1.bf16.xpose.msra.mxu0 0
    %963 = vmatprep.subr.bf16.mxu0 0
    %964 = vmatpush1.bf16.xpose.msra.mxu0 0
    %965 = vmatprep.mubr.bf16.mxu0 %v143
    %966 = vmatmul.mubr.bf16.gmra.mrb[0].mxu0 %v142
    %v967 = vpop.f32.mrb[0].mxu0
    %v968 = vadd.f32 %v928, %v967
    %v969 = vpop.f32.mrb[0].mxu0
    %v970 = vpop.f32.mrb[0].mxu0
    %v971 = vpop.f32.mrb[0].mxu0
    %972 = vdwg.mxu0
    %973 = vmatprep.subr.bf16.mxu0 %v332
    %974 = vmatpush1.bf16.xpose.msra.mxu0 %v331
    %975 = vmatprep.subr.bf16.mxu0 0
    %976 = vmatpush1.bf16.xpose.msra.mxu0 0
    %977 = vmatprep.subr.bf16.mxu0 0
    %978 = vmatpush1.bf16.xpose.msra.mxu0 0
    %979 = vmatprep.subr.bf16.mxu0 0
    %980 = vmatpush1.bf16.xpose.msra.mxu0 0
    %981 = vmatprep.subr.bf16.mxu0 0
    %982 = vmatpush1.bf16.xpose.msra.mxu0 0
    %983 = vmatprep.subr.bf16.mxu0 0
    %984 = vmatpush1.bf16.xpose.msra.mxu0 0
    %985 = vmatprep.subr.bf16.mxu0 0
    %986 = vmatpush1.bf16.xpose.msra.mxu0 0
    %987 = vmatprep.subr.bf16.mxu0 0
    %988 = vmatpush1.bf16.xpose.msra.mxu0 0
    %989 = vmatprep.subr.bf16.mxu0 0
    %990 = vmatpush1.bf16.xpose.msra.mxu0 0
    %991 = vmatprep.subr.bf16.mxu0 0
    %992 = vmatpush1.bf16.xpose.msra.mxu0 0
    %993 = vmatprep.subr.bf16.mxu0 0
    %994 = vmatpush1.bf16.xpose.msra.mxu0 0
    %995 = vmatprep.subr.bf16.mxu0 0
    %996 = vmatpush1.bf16.xpose.msra.mxu0 0
    %997 = vmatprep.subr.bf16.mxu0 0
    %998 = vmatpush1.bf16.xpose.msra.mxu0 0
    %999 = vmatprep.subr.bf16.mxu0 0
    %1000 = vmatpush1.bf16.xpose.msra.mxu0 0
    %1001 = vmatprep.subr.bf16.mxu0 0
    %1002 = vmatpush1.bf16.xpose.msra.mxu0 0
    %1003 = vmatprep.subr.bf16.mxu0 0
    %1004 = vmatpush1.bf16.xpose.msra.mxu0 0
    %1005 = vmatprep.mubr.bf16.mxu0 %v145
    %1006 = vmatmul.mubr.bf16.gmra.mrb[0].mxu0 %v144
    %v1007 = vpop.f32.mrb[0].mxu0
    %v1008 = vadd.f32 %v968, %v1007
    %v1009 = vpop.f32.mrb[0].mxu0
    %v1010 = vpop.f32.mrb[0].mxu0
    %v1011 = vpop.f32.mrb[0].mxu0
    %1012 = vdwg.mxu0
    %1013 = vmatprep.subr.bf16.mxu0 %v334
    %1014 = vmatpush1.bf16.xpose.msra.mxu0 %v333
    %1015 = vmatprep.subr.bf16.mxu0 0
    %1016 = vmatpush1.bf16.xpose.msra.mxu0 0
    %1017 = vmatprep.subr.bf16.mxu0 0
    %1018 = vmatpush1.bf16.xpose.msra.mxu0 0
    %1019 = vmatprep.subr.bf16.mxu0 0
    %1020 = vmatpush1.bf16.xpose.msra.mxu0 0
    %1021 = vmatprep.subr.bf16.mxu0 0
    %1022 = vmatpush1.bf16.xpose.msra.mxu0 0
    %1023 = vmatprep.subr.bf16.mxu0 0
    %1024 = vmatpush1.bf16.xpose.msra.mxu0 0
    %1025 = vmatprep.subr.bf16.mxu0 0
    %1026 = vmatpush1.bf16.xpose.msra.mxu0 0
    %1027 = vmatprep.subr.bf16.mxu0 0
    %1028 = vmatpush1.bf16.xpose.msra.mxu0 0
    %1029 = vmatprep.subr.bf16.mxu0 0
    %1030 = vmatpush1.bf16.xpose.msra.mxu0 0
    %1031 = vmatprep.subr.bf16.mxu0 0
    %1032 = vmatpush1.bf16.xpose.msra.mxu0 0
    %1033 = vmatprep.subr.bf16.mxu0 0
    %1034 = vmatpush1.bf16.xpose.msra.mxu0 0
    %1035 = vmatprep.subr.bf16.mxu0 0
    %1036 = vmatpush1.bf16.xpose.msra.mxu0 0
    %1037 = vmatprep.subr.bf16.mxu0 0
    %1038 = vmatpush1.bf16.xpose.msra.mxu0 0
    %1039 = vmatprep.subr.bf16.mxu0 0
    %1040 = vmatpush1.bf16.xpose.msra.mxu0 0
    %1041 = vmatprep.subr.bf16.mxu0 0
    %1042 = vmatpush1.bf16.xpose.msra.mxu0 0
    %1043 = vmatprep.subr.bf16.mxu0 0
    %1044 = vmatpush1.bf16.xpose.msra.mxu0 0
    %1045 = vmatprep.mubr.bf16.mxu0 %v147
    %1046 = vmatmul.mubr.bf16.gmra.mrb[0].mxu0 %v146
    %v1047 = vpop.f32.mrb[0].mxu0
    %v1048 = vadd.f32 %v1008, %v1047
    %v1049 = vpop.f32.mrb[0].mxu0
    %v1050 = vpop.f32.mrb[0].mxu0
    %v1051 = vpop.f32.mrb[0].mxu0
    %1052 = vdwg.mxu0
    %1053 = vmatprep.subr.bf16.mxu0 %v336
    %1054 = vmatpush1.bf16.xpose.msra.mxu0 %v335
    %1055 = vmatprep.subr.bf16.mxu0 0
    %1056 = vmatpush1.bf16.xpose.msra.mxu0 0
    %1057 = vmatprep.subr.bf16.mxu0 0
    %1058 = vmatpush1.bf16.xpose.msra.mxu0 0
    %1059 = vmatprep.subr.bf16.mxu0 0
    %1060 = vmatpush1.bf16.xpose.msra.mxu0 0
    %1061 = vmatprep.subr.bf16.mxu0 0
    %1062 = vmatpush1.bf16.xpose.msra.mxu0 0
    %1063 = vmatprep.subr.bf16.mxu0 0
    %1064 = vmatpush1.bf16.xpose.msra.mxu0 0
    %1065 = vmatprep.subr.bf16.mxu0 0
    %1066 = vmatpush1.bf16.xpose.msra.mxu0 0
    %1067 = vmatprep.subr.bf16.mxu0 0
    %1068 = vmatpush1.bf16.xpose.msra.mxu0 0
    %1069 = vmatprep.subr.bf16.mxu0 0
    %1070 = vmatpush1.bf16.xpose.msra.mxu0 0
    %1071 = vmatprep.subr.bf16.mxu0 0
    %1072 = vmatpush1.bf16.xpose.msra.mxu0 0
    %1073 = vmatprep.subr.bf16.mxu0 0
    %1074 = vmatpush1.bf16.xpose.msra.mxu0 0
    %1075 = vmatprep.subr.bf16.mxu0 0
    %1076 = vmatpush1.bf16.xpose.msra.mxu0 0
    %1077 = vmatprep.subr.bf16.mxu0 0
    %1078 = vmatpush1.bf16.xpose.msra.mxu0 0
    %1079 = vmatprep.subr.bf16.mxu0 0
    %1080 = vmatpush1.bf16.xpose.msra.mxu0 0
    %1081 = vmatprep.subr.bf16.mxu0 0
    %1082 = vmatpush1.bf16.xpose.msra.mxu0 0
    %1083 = vmatprep.subr.bf16.mxu0 0
    %1084 = vmatpush1.bf16.xpose.msra.mxu0 0
    %1085 = vmatprep.mubr.bf16.mxu0 %v149
    %1086 = vmatmul.mubr.bf16.gmra.mrb[0].mxu0 %v148
    %v1087 = vpop.f32.mrb[0].mxu0
    %v1088 = vadd.f32 %v1048, %v1087
    %v1089 = vpop.f32.mrb[0].mxu0
    %v1090 = vpop.f32.mrb[0].mxu0
    %v1091 = vpop.f32.mrb[0].mxu0
    %1092 = vdwg.mxu0
    %vm1093 = vcmask 125952
    %1094 = vst.msk [vmem:[#allocation7] sm:$0xf] %vm1093, %v1088
    // Predicated region
    $region22: #{_triplets_head_matmul.1} parent=1 // pred_check
      _
    $region23: #{_triplets_head_matmul.1} parent=1 // pred_check_branch
      %1096 = sbr.rel (0) target = $region25
    $region24: #{_triplets_head_matmul.1} parent=1 // pred_region
      %s1098 = ssub.s32 64, 64
      %1099 = vsyncadd [#allocation4], %s1098
      %s1101 = sshll.u32 [#allocation7], 4
      %s1102 = int_to_ptr.vmem [resolvable:$true] %s1101
      %1104 = dma.vmem_to_hbm [thread:$0]  %s1102, 64, %s3, [#allocation4]
    $region25: #{_triplets_head_matmul.1} parent=1 // pred_fallthru
      _
    // Predicated region
    $region26: #{_triplets_head_matmul.1} parent=1 // pred_check
      _
    $region27: #{_triplets_head_matmul.1} parent=1 // pred_check_branch
      %1106 = sbr.rel (0) target = $region29
    $region28: #{_triplets_head_matmul.1} parent=1 // pred_region
      %1107 = dma.done [#allocation4], 64
    $region29: #{_triplets_head_matmul.1} parent=1 // pred_fallthru
      _
    %1108 = vsyncpa [#allocation3], 1
    %1109 = vsyncpa [#allocation6], 1
    %1110 = vsyncpa [#allocation4], 1

</llo_original>
